<compile_context>
chip_gen: v7x
topology: tpu7x:2x2x1
jax: 0.10.0
libtpu: 0.0.40
codegen_flags: <defaults>
</compile_context>

<pallas_src>
import jax
import jax.numpy as jnp
from jax import lax
from jax.experimental import pallas as pl
from jax.experimental.pallas import tpu as pltpu

_LANE = 128
_TARGET_TILE = 512             # per-axis tile target for the trailing plane
_TARGET_BLOCK_BYTES = 2 << 20  # ~2 MiB per buffer -> <=8 MiB with double-buffering


def _pick_tile(dim: int, target: int = _TARGET_TILE) -> int:
    """Tile for one of the trailing two dims.

    Full-extent blocks are always legal; tiled blocks must be multiples of 128
    because each trailing dim is the lane dim of either the input or the
    (transposed) output block (128 also covers the 8/16/32 sublane packing).
    """
    if dim <= target:
        return dim
    return max(_LANE, (target // _LANE) * _LANE)


# ---------------------------------------------------------------------------
# Kernels
# ---------------------------------------------------------------------------
def _batched_transpose_kernel(x_ref, o_ref):
    # x_ref: (Bblk, TR, TC) -> o_ref: (Bblk, TC, TR)
    # Loop over the folded batch dim; each slice is a plain 2-D tile transpose.
    n = x_ref.shape[0]

    def body(b, carry):
        o_ref[b] = x_ref[b].T
        return carry

    lax.fori_loop(0, n, body, 0, unroll=(n <= 8))


def _transpose_kernel_2d(x_ref, o_ref):
    # (TR, TC) tile -> (TC, TR) tile
    o_ref[...] = x_ref[...].T


# ---------------------------------------------------------------------------
# Pallas paths
# ---------------------------------------------------------------------------
def _transpose_last2_batched(x):
    """x: (B, R, C) -> (B, C, R) with a tiled, batch-folded Pallas transpose."""
    B, R, C = x.shape
    itemsize = jnp.dtype(x.dtype).itemsize

    TR = _pick_tile(R)
    TC = _pick_tile(C)

    plane_bytes = max(TR * TC * itemsize, 1)
    # Fold batch into the block so each DMA is ~1-2 MiB (big blocks are the
    # main lever for this memory-bound kernel).
    Bblk = int(max(1, min(B, _TARGET_BLOCK_BYTES // plane_bytes)))
    blk_bytes = Bblk * plane_bytes

    grid = (pl.cdiv(B, Bblk), pl.cdiv(R, TR), pl.cdiv(C, TC))

    # in/out double-buffered -> ~4x block bytes; keep a comfortable floor and a
    # v7x-safe cap (64 MiB physical VMEM, leave headroom).
    vmem_limit = int(min(max(8 * blk_bytes, 32 << 20), 48 << 20))

    return pl.pallas_call(
        _batched_transpose_kernel,
        out_shape=jax.ShapeDtypeStruct((B, C, R), x.dtype),
        grid=grid,
        in_specs=[pl.BlockSpec((Bblk, TR, TC), lambda b, i, j: (b, i, j))],
        # transpose path: swap the tile indices in the output index_map
        out_specs=pl.BlockSpec((Bblk, TC, TR), lambda b, i, j: (b, j, i)),
        compiler_params=pltpu.CompilerParams(
            dimension_semantics=("parallel", "arbitrary", "arbitrary"),
            vmem_limit_bytes=vmem_limit,
        ),
    )(x)


def _transpose_general(x, perm):
    """Leading axes permuted AND last two axes swapped (rare path)."""
    n = x.ndim
    inv = [0] * n
    for k, a in enumerate(perm):
        inv[a] = k

    in_shape = x.shape
    out_shape = tuple(in_shape[a] for a in perm)
    R, C = in_shape[-2], in_shape[-1]
    itemsize = jnp.dtype(x.dtype).itemsize

    TR = _pick_tile(R)
    TC = _pick_tile(C)
    n_lead = n - 2

    grid = tuple(out_shape[k] for k in range(n_lead)) + (pl.cdiv(R, TR), pl.cdiv(C, TC))

    def in_index_map(*g):
        lead = g[:n_lead]
        # input leading axis d lives at output position inv[d] (< n_lead here)
        return tuple(lead[inv[d]] for d in range(n_lead)) + (g[n_lead], g[n_lead + 1])

    def out_index_map(*g):
        return tuple(g[:n_lead]) + (g[n_lead + 1], g[n_lead])

    in_block = tuple([pl.Squeezed()] * n_lead) + (TR, TC)
    out_block = tuple([pl.Squeezed()] * n_lead) + (TC, TR)

    blk_bytes = TR * TC * itemsize
    vmem_limit = int(min(max(8 * blk_bytes, 32 << 20), 48 << 20))

    return pl.pallas_call(
        _transpose_kernel_2d,
        out_shape=jax.ShapeDtypeStruct(out_shape, x.dtype),
        grid=grid,
        in_specs=[pl.BlockSpec(in_block, in_index_map)],
        out_specs=pl.BlockSpec(out_block, out_index_map),
        compiler_params=pltpu.CompilerParams(
            dimension_semantics=("parallel",) * n_lead + ("arbitrary", "arbitrary"),
            vmem_limit_bytes=vmem_limit,
        ),
    )(x)


# ---------------------------------------------------------------------------
# Public wrapper
# ---------------------------------------------------------------------------
def pallas_permute(x, perm):
    n = x.ndim
    perm = tuple(int(a) + n if int(a) < 0 else int(a) for a in perm)
    assert sorted(perm) == list(range(n)), f"bad permutation {perm} for rank {n}"

    if n < 2 or perm == tuple(range(n)):
        return x  # rank-0/1 or identity: nothing to move

    if 0 in x.shape:
        return jnp.transpose(x, perm)  # degenerate, nothing to DMA

    last_preserved = perm[-2:] == (n - 2, n - 1)
    last_swapped = perm[-2:] == (n - 1, n - 2)

    if last_preserved:
        # Leading-axis-only permute: a strided HBM copy that XLA already emits
        # near-roofline; a sequential Pallas grid loop can only match it.
        return jnp.transpose(x, perm)

    if not last_swapped:
        # TODO(synk): permutations that move an interior axis into the lane
        # (last) position need an in-kernel gather/relayout; fall back to XLA.
        return jnp.transpose(x, perm)

    if perm[: n - 2] == tuple(range(n - 2)):
        # Common case (e.g. Permute(0, 2, 1)): collapse leading dims and fold
        # them into the block for large DMAs.
        lead_shape = x.shape[: n - 2]
        B = 1
        for d in lead_shape:
            B *= d
        R, C = x.shape[-2], x.shape[-1]
        y = _transpose_last2_batched(x.reshape(B, R, C))
        return y.reshape(lead_shape + (C, R))

    return _transpose_general(x, perm)


class Permute:
    """JAX/Pallas equivalent of the PyTorch Permute nn.Module."""

    def __init__(self, *args):
        if len(args) == 1 and isinstance(args[0], (tuple, list)):
            args = tuple(args[0])
        self.args = args

    def __call__(self, x):
        return pallas_permute(x, self.args)


if __name__ == "__main__":
    key = jax.random.PRNGKey(0)

    # Common usage in the source codebase: Permute(0, 2, 1) on a (B, C, T) tensor.
    B, C, T = 2, 8, 32
    x = jax.random.normal(key, (B, C, T), dtype=jnp.float32)
    y = jax.block_until_ready(Permute(0, 2, 1)(x))
    ref = jnp.transpose(x, (0, 2, 1))
    assert y.shape == (B, T, C), y.shape
    assert jnp.allclose(y, ref), "permute(0,2,1) mismatch"

    # Pure 2-D transpose (batched kernel with B=1), lane-dense output.
    x2 = jax.random.normal(jax.random.fold_in(key, 1), (256, 384), dtype=jnp.float32)
    y2 = jax.block_until_ready(Permute(1, 0)(x2))
    assert jnp.allclose(y2, x2.T), "permute(1,0) mismatch"

    # bf16 path (sub-32-bit sublane packing; full-extent / 128-aligned tiles).
    x3 = jax.random.normal(jax.random.fold_in(key, 2), (2, 3, 128, 256)).astype(jnp.bfloat16)
    y3 = jax.block_until_ready(Permute(0, 1, 3, 2)(x3))
    assert jnp.array_equal(y3, jnp.transpose(x3, (0, 1, 3, 2))), "bf16 permute mismatch"

    # Leading-axis-only permute short-circuits to XLA (perf-motivated fallback).
    x4 = jax.random.normal(jax.random.fold_in(key, 3), (2, 3, 8, 32), dtype=jnp.float32)
    y4 = jax.block_until_ready(Permute(1, 0, 2, 3)(x4))
    assert jnp.allclose(y4, jnp.transpose(x4, (1, 0, 2, 3))), "permute(1,0,2,3) mismatch"

    # General path: leading axes permuted AND last two swapped.
    x5 = jax.random.normal(jax.random.fold_in(key, 4), (3, 2, 8, 32), dtype=jnp.float32)
    y5 = jax.block_until_ready(Permute(1, 0, 3, 2)(x5))
    assert jnp.allclose(y5, jnp.transpose(x5, (1, 0, 3, 2))), "permute(1,0,3,2) mismatch"

    print("KERNEL_OK")
</pallas_src>

<mosaic_0001>
module attributes {stable_mosaic.version = 11 : i64} {
  func.func @_batched_transpose_kernel(%arg0: i32, %arg1: i32, %arg2: i32, %arg3: memref<2x8x32xf32, #tpu.memory_space<vmem>>, %arg4: memref<2x32x8xf32, #tpu.memory_space<vmem>>) attributes {dimension_semantics = [#tpu.dimension_semantics<parallel>, #tpu.dimension_semantics<arbitrary>, #tpu.dimension_semantics<arbitrary>], iteration_bounds = array<i64: 1, 1, 1>, scalar_prefetch = 0 : i64, scratch_operands = 0 : i64, tpu.core_type = #tpu.core_type<tc>, window_params = [{transform_indices = @transform_0, window_bounds = array<i64: 2, 8, 32>}, {transform_indices = @transform_1, window_bounds = array<i64: 2, 32, 8>}]} {
    %c0_i32 = arith.constant 0 : i32
    %0 = arith.index_cast %c0_i32 : i32 to index
    %c0 = arith.constant 0 : index
    %c0_0 = arith.constant 0 : index
    %1 = vector.load %arg3[%0, %c0, %c0_0] : memref<2x8x32xf32, #tpu.memory_space<vmem>>, vector<1x8x32xf32>
    %2 = vector.shape_cast %1 : vector<1x8x32xf32> to vector<8x32xf32>
    %3 = tpu.transpose %2, [1, 0] : vector<8x32xf32> -> vector<32x8xf32>
    %4 = arith.index_cast %c0_i32 : i32 to index
    %c0_1 = arith.constant 0 : index
    %c0_2 = arith.constant 0 : index
    %5 = vector.load %arg4[%4, %c0_1, %c0_2] : memref<2x32x8xf32, #tpu.memory_space<vmem>>, vector<1x32x8xf32>
    %6 = vector.shape_cast %5 : vector<1x32x8xf32> to vector<32x8xf32>
    %7 = vector.shape_cast %3 : vector<32x8xf32> to vector<1x32x8xf32>
    tpu.vector_store %arg4[%4, %c0_1, %c0_2], %7 {strides = array<i32>} : memref<2x32x8xf32, #tpu.memory_space<vmem>>, vector<1x32x8xf32>,
    %c1_i32 = arith.constant 1 : i32
    %8 = arith.index_cast %c1_i32 : i32 to index
    %c0_3 = arith.constant 0 : index
    %c0_4 = arith.constant 0 : index
    %9 = vector.load %arg3[%8, %c0_3, %c0_4] : memref<2x8x32xf32, #tpu.memory_space<vmem>>, vector<1x8x32xf32>
    %10 = vector.shape_cast %9 : vector<1x8x32xf32> to vector<8x32xf32>
    %11 = tpu.transpose %10, [1, 0] : vector<8x32xf32> -> vector<32x8xf32>
    %12 = arith.index_cast %c1_i32 : i32 to index
    %c0_5 = arith.constant 0 : index
    %c0_6 = arith.constant 0 : index
    %13 = vector.load %arg4[%12, %c0_5, %c0_6] : memref<2x32x8xf32, #tpu.memory_space<vmem>>, vector<1x32x8xf32>
    %14 = vector.shape_cast %13 : vector<1x32x8xf32> to vector<32x8xf32>
    %15 = vector.shape_cast %11 : vector<32x8xf32> to vector<1x32x8xf32>
    tpu.vector_store %arg4[%12, %c0_5, %c0_6], %15 {strides = array<i32>} : memref<2x32x8xf32, #tpu.memory_space<vmem>>, vector<1x32x8xf32>,
    %c2_i32 = arith.constant 2 : i32
    return
  }
  func.func @transform_0(%arg0: i32, %arg1: i32, %arg2: i32) -> (i32, i32, i32) {
    %c0_i32 = arith.constant 0 : i32
    return %arg0, %arg1, %arg2 : i32, i32, i32
  }
  func.func @transform_1(%arg0: i32, %arg1: i32, %arg2: i32) -> (i32, i32, i32) {
    %c0_i32 = arith.constant 0 : i32
    return %arg0, %arg2, %arg1 : i32, i32, i32
  }
}

</mosaic_0001>

<llo_original>
// kernel: tpu_custom_call.1
$region0: #{tpu_custom_call.1}
  #allocation0 [shape = 'u32[]', space=smem, size = 0x4, offset = 0x4, fixed_abs, tag = 'smem constant byte address 0x4 - core index']
  #allocation1 [shape = 'u32[144,128]{1,0:T(1,128)}', space=vmem, size = 0x12000, scoped, tag = 'internal scratch']
  %s0 = inlined_call_operand.hbm [shape: f32[2,8,32], index: 0, kind: input, shape index: {}]
  %s1 = inlined_call_operand.vmem [shape: f32[2,32,8], index: 1, kind: output, shape index: {}]
  %s2 = sld [smem:[#allocation0]]
  $region18: #{tpu_custom_call.1} parent=0
    _
  %s4 = ssub.s32 1, %s2
  %s5 = scalar_select 0, %s4, %s2
  $region1: #{tpu_custom_call.1} parent=0
    #allocation2 [shape = 'u8[8192]{0}', space=vmem, size = 0x2000, scoped, tag = 'input window, operand 0, single buffered']
    #allocation3 [shape = 's32[1]{0}', space=sflag, size = 0x4, scoped, tag = 'scoped memory for tpu_custom_call.1']
    %6 = vsyncpa [#allocation3], 0
    // Predicated region
    $region2: #{tpu_custom_call.1} parent=1 // pred_check
      _
    $region3: #{tpu_custom_call.1} parent=1 // pred_check_branch
      %8 = sbr.rel (0) target = $region5
    $region4: #{tpu_custom_call.1} parent=1 // pred_region
      %s10 = ssub.s32 256, 256
      %11 = vsyncadd [#allocation3], %s10
      %s12 = sshll.u32 [#allocation2], 4
      %s13 = int_to_ptr.vmem [resolvable:$true] %s12
      %18 = dma.hbm_to_vmem [thread:$0]  %s0, 256, %s13, [#allocation3], 128, 128, 8
    $region5: #{tpu_custom_call.1} parent=1 // pred_fallthru
      _
    // Predicated region
    $region6: #{tpu_custom_call.1} parent=1 // pred_check
      _
    $region7: #{tpu_custom_call.1} parent=1 // pred_check_branch
      %20 = sbr.rel (0) target = $region9
    $region8: #{tpu_custom_call.1} parent=1 // pred_region
      %21 = dma.done [#allocation3], 256
    $region9: #{tpu_custom_call.1} parent=1 // pred_fallthru
      _
    %v22 = vld [vmem:[#allocation2] sm:$0xff]
    %23 = vxpose.xlu0.b32.start [1/16] %v22, 128
    %24 = vxpose.xlu0.b32.cont [2/16] 0.0, 128
    %25 = vxpose.xlu0.b32.cont [3/16] 0.0, 128
    %26 = vxpose.xlu0.b32.cont [4/16] 0.0, 128
    %27 = vxpose.xlu0.b32.cont [5/16] 0.0, 128
    %28 = vxpose.xlu0.b32.cont [6/16] 0.0, 128
    %29 = vxpose.xlu0.b32.cont [7/16] 0.0, 128
    %30 = vxpose.xlu0.b32.cont [8/16] 0.0, 128
    %31 = vxpose.xlu0.b32.cont [9/16] 0.0, 128
    %32 = vxpose.xlu0.b32.cont [10/16] 0.0, 128
    %33 = vxpose.xlu0.b32.cont [11/16] 0.0, 128
    %34 = vxpose.xlu0.b32.cont [12/16] 0.0, 128
    %35 = vxpose.xlu0.b32.cont [13/16] 0.0, 128
    %36 = vxpose.xlu0.b32.cont [14/16] 0.0, 128
    %37 = vxpose.xlu0.b32.cont [15/16] 0.0, 128
    %38 = vxpose.xlu0.b32.end [16/16] 0.0, 128
    %v39 = vpop.trf.xlu0
    %v40 = vpop.trf.xlu0
    %v41 = vpop.trf.xlu0
    %v42 = vpop.trf.xlu0
    %v43 = vpop.trf.xlu0
    %v44 = vpop.trf.xlu0
    %v45 = vpop.trf.xlu0
    %v46 = vpop.trf.xlu0
    %v47 = vpop.trf.xlu0
    %v48 = vpop.trf.xlu0
    %v49 = vpop.trf.xlu0
    %v50 = vpop.trf.xlu0
    %v51 = vpop.trf.xlu0
    %v52 = vpop.trf.xlu0
    %v53 = vpop.trf.xlu0
    %v54 = vpop.trf.xlu0
    %vm55 = vcmask 64512
    %56 = vst.msk [vmem:[%s1] sm:$0xff] %vm55, %v39
    %57 = vst.msk [vmem:[%s1 + $0x8] sm:$0xff] %vm55, %v40
    %58 = vst.msk [vmem:[%s1 + $0x10] sm:$0xff] %vm55, %v41
    %59 = vst.msk [vmem:[%s1 + $0x18] sm:$0xff] %vm55, %v42
    %s60 = scalar_lea.vmem [#allocation2], 8
    %v61 = vld [vmem:[%s60] sm:$0xff]
    %62 = vxpose.xlu0.b32.start [1/16] %v61, 128
    %63 = vxpose.xlu0.b32.cont [2/16] 0.0, 128
    %64 = vxpose.xlu0.b32.cont [3/16] 0.0, 128
    %65 = vxpose.xlu0.b32.cont [4/16] 0.0, 128
    %66 = vxpose.xlu0.b32.cont [5/16] 0.0, 128
    %67 = vxpose.xlu0.b32.cont [6/16] 0.0, 128
    %68 = vxpose.xlu0.b32.cont [7/16] 0.0, 128
    %69 = vxpose.xlu0.b32.cont [8/16] 0.0, 128
    %70 = vxpose.xlu0.b32.cont [9/16] 0.0, 128
    %71 = vxpose.xlu0.b32.cont [10/16] 0.0, 128
    %72 = vxpose.xlu0.b32.cont [11/16] 0.0, 128
    %73 = vxpose.xlu0.b32.cont [12/16] 0.0, 128
    %74 = vxpose.xlu0.b32.cont [13/16] 0.0, 128
    %75 = vxpose.xlu0.b32.cont [14/16] 0.0, 128
    %76 = vxpose.xlu0.b32.cont [15/16] 0.0, 128
    %77 = vxpose.xlu0.b32.end [16/16] 0.0, 128
    %v78 = vpop.trf.xlu0
    %v79 = vpop.trf.xlu0
    %v80 = vpop.trf.xlu0
    %v81 = vpop.trf.xlu0
    %v82 = vpop.trf.xlu0
    %v83 = vpop.trf.xlu0
    %v84 = vpop.trf.xlu0
    %v85 = vpop.trf.xlu0
    %v86 = vpop.trf.xlu0
    %v87 = vpop.trf.xlu0
    %v88 = vpop.trf.xlu0
    %v89 = vpop.trf.xlu0
    %v90 = vpop.trf.xlu0
    %v91 = vpop.trf.xlu0
    %v92 = vpop.trf.xlu0
    %v93 = vpop.trf.xlu0
    %s94 = scalar_lea.vmem %s1, 32
    %95 = vst.msk [vmem:[%s94] sm:$0xff] %vm55, %v78
    %96 = vst.msk [vmem:[%s94 + $0x8] sm:$0xff] %vm55, %v79
    %97 = vst.msk [vmem:[%s94 + $0x10] sm:$0xff] %vm55, %v80
    %98 = vst.msk [vmem:[%s94 + $0x18] sm:$0xff] %vm55, %v81
    // Predicated region
    $region10: #{tpu_custom_call.1} parent=1 // pred_check
      _
    $region11: #{tpu_custom_call.1} parent=1 // pred_check_branch
      %100 = sbr.rel (0) target = $region13
    $region12: #{tpu_custom_call.1} parent=1 // pred_region
      _
    $region13: #{tpu_custom_call.1} parent=1 // pred_fallthru
      _
    // Predicated region
    $region14: #{tpu_custom_call.1} parent=1 // pred_check
      _
    $region15: #{tpu_custom_call.1} parent=1 // pred_check_branch
      %102 = sbr.rel (0) target = $region17
    $region16: #{tpu_custom_call.1} parent=1 // pred_region
      _
    $region17: #{tpu_custom_call.1} parent=1 // pred_fallthru
      _
    %103 = vsyncpa [#allocation3], 1

</llo_original>
